<compile_context>
chip_gen: v7x
topology: tpu7x:2x2x1
jax: 0.10.0
libtpu: 0.0.40
codegen_flags: <defaults>
</compile_context>

<pallas_src>
import functools

import jax
import jax.numpy as jnp
from jax.experimental import pallas as pl
from jax.experimental.pallas import tpu as pltpu

hidden_size = 10
s_size = 200

_GRIDLESS_MAX_B = 512   # single-block (no grid) path for B <= this
_TILE_B = 512           # batch tile for stacked batches
_K2 = 32                # padded 2*hidden (=20) contraction dim of 2nd matmul


def _round_up(x, m):
    return ((x + m - 1) // m) * m


def _softplus(z):
    # numerically stable softplus, pure elementwise (VPU/EUP friendly)
    return jnp.maximum(z, 0.0) + jnp.log1p(jnp.exp(-jnp.abs(z)))


def _make_fused_heads_kernel(rows, num_inputs, ni_pad):
    """Kernel factory. `rows` = batch rows per kernel invocation (static).

    Slab layout (f32, 128 lanes wide):
      rows [0, ni_pad)            : W1 of both heads, concat along lanes 0:2H
      row   ni_pad                : b1 (both heads)            (8-row block)
      rows [ni_pad+8, +_K2)       : W2 block-diagonal, (32,128)
      row   ni_pad+8+_K2          : b2 (both heads)            (8-row block)
    """
    o_b1 = ni_pad
    o_w2 = ni_pad + 8
    o_b2 = ni_pad + 8 + _K2
    m_pad = _round_up(max(rows, 8), 8)
    needs_pad = (m_pad != rows)

    def compute(s, slab_ref, out_ref):
        w1 = slab_ref[0:num_inputs, :]          # (NI, 128)
        b1 = slab_ref[o_b1:o_b1 + 1, :]         # (1, 128)
        w2 = slab_ref[o_w2:o_w2 + _K2, :]       # (32, 128), block-diag rows 0:2H
        b2 = slab_ref[o_b2:o_b2 + 1, :]         # (1, 128)

        # Fused alpha+beta heads: two matmuls total.
        h = jnp.dot(s, w1, preferred_element_type=jnp.float32) + b1        # (m, 128)
        z = jnp.dot(h[:, :_K2], w2, preferred_element_type=jnp.float32) + b2
        sp = _softplus(z)
        if needs_pad:
            sp = sp[0:rows, :]
        # Lanes 0:2 = alpha head, lanes 2:4 = beta head, lanes 4:128 = padding.
        out_ref[...] = sp.astype(out_ref.dtype)

    if needs_pad:
        # Tiny / unaligned batch: zero-fill a VMEM scratch to a sublane multiple
        # inside the kernel (no wrapper-side pad, no extra HBM roundtrip).
        def kernel(state_ref, slab_ref, out_ref, s_scr):
            s_scr[...] = jnp.zeros_like(s_scr)
            s_scr[0:rows, :] = state_ref[...]
            compute(s_scr[...], slab_ref, out_ref)
    else:
        def kernel(state_ref, slab_ref, out_ref):
            compute(state_ref[...], slab_ref, out_ref)

    return kernel, m_pad


def init_params(key, num_inputs, num_actions, hidden):
    """Deterministic parameter init mirroring the nn.Linear shapes in __init__.

    Linear weights are stored pre-transposed as (in, out); biases as (1, out).
    """
    ks = jax.random.split(key, 14)

    def lin(kw, kb, fan_in, fan_out):
        bound = 1.0 / jnp.sqrt(jnp.float32(fan_in))
        w = jax.random.uniform(kw, (fan_in, fan_out), jnp.float32, -bound, bound)
        b = jax.random.uniform(kb, (1, fan_out), jnp.float32, -bound, bound)
        return w, b

    p = {}
    # critic / actor layers exist in __init__ but are unused in forward()
    p["critic_w1"], p["critic_b1"] = lin(ks[0], ks[1], num_inputs, hidden)
    p["critic_w2"], p["critic_b2"] = lin(ks[2], ks[3], hidden, 1)
    p["actor_w2"], p["actor_b2"] = lin(ks[4], ks[5], hidden, num_actions)
    # alpha head
    p["wa1"], p["ba1"] = lin(ks[6], ks[7], num_inputs, hidden)
    p["wa2"], p["ba2"] = lin(ks[8], ks[9], hidden, 2)
    # beta head
    p["wb1"], p["bb1"] = lin(ks[10], ks[11], num_inputs, hidden)
    p["wb2"], p["bb2"] = lin(ks[12], ks[13], hidden, 2)
    return p


def pack_params(params, num_inputs, hidden):
    """Build the single (ni_pad + 48, 128) f32 parameter slab. Call ONCE."""
    f32 = jnp.float32
    ni_pad = _round_up(max(num_inputs, 8), 8)
    h2 = 2 * hidden
    assert h2 <= _K2, "2*hidden must fit in the padded K2 contraction dim"

    w1cat = jnp.concatenate([params["wa1"], params["wb1"]], axis=1)   # (NI, 2H)
    b1cat = jnp.concatenate([params["ba1"], params["bb1"]], axis=1)   # (1, 2H)
    b2cat = jnp.concatenate([params["ba2"], params["bb2"]], axis=1)   # (1, 4)

    w1_pad = jnp.zeros((ni_pad, 128), f32).at[:num_inputs, :h2].set(w1cat)
    b1_pad = jnp.zeros((8, 128), f32).at[0:1, :h2].set(b1cat)
    # Block-diagonal second layer stored at its padded K (32 rows), exact zeros
    # everywhere off the two diagonal blocks (no cross-talk between heads).
    w2_pad = (jnp.zeros((_K2, 128), f32)
              .at[:hidden, 0:2].set(params["wa2"])
              .at[hidden:h2, 2:4].set(params["wb2"]))
    b2_pad = jnp.zeros((8, 128), f32).at[0:1, 0:4].set(b2cat)

    slab = jnp.concatenate([w1_pad, b1_pad, w2_pad, b2_pad], axis=0)  # (ni_pad+48, 128)
    return slab, ni_pad


def _fused_heads(state, slab, num_inputs, ni_pad):
    """Pallas call: returns (B, 128) with [alpha(2) | beta(2) | zeros...] lanes."""
    B, NI = state.shape
    state = state.astype(jnp.float32)

    if B <= _GRIDLESS_MAX_B:
        # Gridless fast path: single DMA-in / compute / DMA-out, no pipeline.
        kernel, m_pad = _make_fused_heads_kernel(B, num_inputs, ni_pad)
        scratch = []
        if m_pad != B:
            scratch = [pltpu.VMEM((m_pad, NI), jnp.float32)]
        return pl.pallas_call(
            kernel,
            out_shape=jax.ShapeDtypeStruct((B, 128), jnp.float32),
            scratch_shapes=scratch,
        )(state, slab)

    # Stacked-batch path: 512-row tiles, >= 2 grid steps, parallel semantics
    # (shards across v7x's two TensorCores; amortizes per-step overhead on
    # single-TC v5e/v6e). Partial last block handled by Pallas masking.
    tb = _TILE_B
    grid = (pl.cdiv(B, tb),)
    kernel, _ = _make_fused_heads_kernel(tb, num_inputs, ni_pad)
    return pl.pallas_call(
        kernel,
        out_shape=jax.ShapeDtypeStruct((B, 128), jnp.float32),
        grid=grid,
        in_specs=[
            pl.BlockSpec((tb, NI), lambda i: (i, 0)),
            pl.BlockSpec(slab.shape, lambda i: (0, 0)),
        ],
        out_specs=pl.BlockSpec((tb, 128), lambda i: (i, 0)),
        compiler_params=pltpu.CompilerParams(
            dimension_semantics=("parallel",)),
    )(state, slab)


@functools.partial(jax.jit, static_argnames=("num_inputs", "hidden", "ni_pad"))
def bbvi_proc_forward(state, slab, sample_key, num_inputs, hidden, ni_pad):
    """Pallas-backed equivalent of bbvi_proc.forward(state), fully jitted."""
    del hidden  # baked into the slab at pack time
    out = _fused_heads(state, slab, num_inputs, ni_pad)

    # Single consolidated slice of the lane-dense output.
    xy = out[:, 0:4]          # (B, 4): [alpha(2) | beta(2)]
    x = xy[:, 0:2]            # alpha head, softplus'd
    y = xy[:, 2:4]            # beta head, softplus'd

    # Matches torch: Gamma params come from batch row 0 only
    # (x.data[0][0], x.data[0][1]) / (y.data[0][0], y.data[0][1]).
    conc_a = xy[0, 0]
    rate_a = xy[0, 1]
    conc_b = xy[0, 2]
    rate_b = xy[0, 3]

    # Gamma(concentration, rate).sample((s_size,)) equivalent.
    k_a, k_b = jax.random.split(sample_key)
    z_alpha = jax.random.gamma(k_a, conc_a, shape=(s_size,)) / rate_a
    z_beta = jax.random.gamma(k_b, conc_b, shape=(s_size,)) / rate_b

    return z_alpha, z_beta, x, y, (conc_a, rate_a), (conc_b, rate_b)


def _reference_heads(state, params):
    """Pure-JAX reference of the two heads (for correctness check only)."""
    s = state.astype(jnp.float32)
    x = _softplus(jnp.dot(jnp.dot(s, params["wa1"]) + params["ba1"],
                          params["wa2"]) + params["ba2"])
    y = _softplus(jnp.dot(jnp.dot(s, params["wb1"]) + params["bb1"],
                          params["wb2"]) + params["bb2"])
    return x, y


if __name__ == "__main__":
    num_inputs = 8
    num_actions = 4
    batch = 2

    key = jax.random.PRNGKey(0)
    k_param, k_state, k_sample, k_big = jax.random.split(key, 4)

    params = init_params(k_param, num_inputs, num_actions, hidden_size)
    state = jax.random.normal(k_state, (batch, num_inputs), jnp.float32)

    # Pack parameters into one VMEM slab ONCE; reuse across forward calls.
    slab, ni_pad = pack_params(params, num_inputs, hidden_size)

    # --- small-batch (gridless) path, matches the torch forward shapes ---
    z_alpha, z_beta, x, y, gam_a, gam_b = bbvi_proc_forward(
        state, slab, k_sample,
        num_inputs=num_inputs, hidden=hidden_size, ni_pad=ni_pad)
    jax.block_until_ready((z_alpha, z_beta, x, y))

    x_ref, y_ref = _reference_heads(state, params)
    assert jnp.allclose(x, x_ref, rtol=1e-5, atol=1e-5)
    assert jnp.allclose(y, y_ref, rtol=1e-5, atol=1e-5)
    assert z_alpha.shape == (s_size,)
    assert z_beta.shape == (s_size,)
    assert x.shape == (batch, 2)
    assert y.shape == (batch, 2)

    # --- stacked-batch (gridded, tiled) path, incl. a partial last block ---
    big_b = 1064
    big_state = jax.random.normal(k_big, (big_b, num_inputs), jnp.float32)
    _, _, xb, yb, _, _ = bbvi_proc_forward(
        big_state, slab, k_sample,
        num_inputs=num_inputs, hidden=hidden_size, ni_pad=ni_pad)
    jax.block_until_ready((xb, yb))
    xb_ref, yb_ref = _reference_heads(big_state, params)
    assert jnp.allclose(xb, xb_ref, rtol=1e-5, atol=1e-5)
    assert jnp.allclose(yb, yb_ref, rtol=1e-5, atol=1e-5)
    assert xb.shape == (big_b, 2) and yb.shape == (big_b, 2)

    print("KERNEL_OK")
</pallas_src>

<mosaic_0001>
module attributes {stable_mosaic.version = 11 : i64} {
  func.func @kernel(%arg0: memref<2x8xf32, #tpu.memory_space<vmem>>, %arg1: memref<56x128xf32, #tpu.memory_space<vmem>>, %arg2: memref<2x128xf32, #tpu.memory_space<vmem>>, %arg3: memref<8x8xf32, #tpu.memory_space<vmem>>) attributes {dimension_semantics = [], scalar_prefetch = 0 : i64, scratch_operands = 1 : i64, tpu.core_type = #tpu.core_type<tc>} {
    %cst = arith.constant 0.000000e+00 : f32
    %0 = vector.broadcast %cst : f32 to vector<8x8xf32>
    %c0 = arith.constant 0 : index
    %c0_0 = arith.constant 0 : index
    %1 = vector.load %arg3[%c0, %c0_0] : memref<8x8xf32, #tpu.memory_space<vmem>>, vector<8x8xf32>
    tpu.vector_store %arg3[%c0, %c0_0], %0 {strides = array<i32>} : memref<8x8xf32, #tpu.memory_space<vmem>>, vector<8x8xf32>,
    %c0_1 = arith.constant 0 : index
    %c0_2 = arith.constant 0 : index
    %2 = vector.load %arg0[%c0_1, %c0_2] : memref<2x8xf32, #tpu.memory_space<vmem>>, vector<2x8xf32>
    %c0_3 = arith.constant 0 : index
    %c0_4 = arith.constant 0 : index
    %3 = vector.load %arg3[%c0_3, %c0_4] : memref<8x8xf32, #tpu.memory_space<vmem>>, vector<2x8xf32>
    tpu.vector_store %arg3[%c0_3, %c0_4], %2 {strides = array<i32>} : memref<8x8xf32, #tpu.memory_space<vmem>>, vector<2x8xf32>,
    %c0_5 = arith.constant 0 : index
    %c0_6 = arith.constant 0 : index
    %4 = vector.load %arg3[%c0_5, %c0_6] : memref<8x8xf32, #tpu.memory_space<vmem>>, vector<8x8xf32>
    %c0_7 = arith.constant 0 : index
    %c0_8 = arith.constant 0 : index
    %5 = vector.load %arg1[%c0_7, %c0_8] : memref<56x128xf32, #tpu.memory_space<vmem>>, vector<8x128xf32>
    %c8 = arith.constant 8 : index
    %c0_9 = arith.constant 0 : index
    %6 = vector.load %arg1[%c8, %c0_9] : memref<56x128xf32, #tpu.memory_space<vmem>>, vector<1x128xf32>
    %c16 = arith.constant 16 : index
    %c0_10 = arith.constant 0 : index
    %7 = vector.load %arg1[%c16, %c0_10] : memref<56x128xf32, #tpu.memory_space<vmem>>, vector<32x128xf32>
    %c48 = arith.constant 48 : index
    %c0_11 = arith.constant 0 : index
    %8 = vector.load %arg1[%c48, %c0_11] : memref<56x128xf32, #tpu.memory_space<vmem>>, vector<1x128xf32>
    %cst_12 = arith.constant dense<0.000000e+00> : vector<8x128xf32>
    %9 = tpu.matmul %4, %5, %cst_12 {dimension_numbers = #tpu.dot_dimension_numbers<[1], [0], [0], [1], [0, 0, 1, 1], [], []>} : vector<8x8xf32>, vector<8x128xf32>, vector<8x128xf32> -> vector<8x128xf32>
    %10 = vector.broadcast %6 : vector<1x128xf32> to vector<8x128xf32>
    %11 = arith.addf %9, %10 : vector<8x128xf32>
    %12 = vector.extract_strided_slice %11 {offsets = [0, 0], sizes = [8, 32], strides = [1, 1]} : vector<8x128xf32> to vector<8x32xf32>
    %cst_13 = arith.constant dense<0.000000e+00> : vector<8x128xf32>
    %13 = tpu.matmul %12, %7, %cst_13 {dimension_numbers = #tpu.dot_dimension_numbers<[1], [0], [0], [1], [0, 0, 1, 1], [], []>} : vector<8x32xf32>, vector<32x128xf32>, vector<8x128xf32> -> vector<8x128xf32>
    %14 = vector.broadcast %8 : vector<1x128xf32> to vector<8x128xf32>
    %15 = arith.addf %13, %14 : vector<8x128xf32>
    %cst_14 = arith.constant 0.000000e+00 : f32
    %16 = vector.broadcast %cst_14 : f32 to vector<8x128xf32>
    %17 = arith.maximumf %15, %16 : vector<8x128xf32>
    %18 = math.absf %15 : vector<8x128xf32>
    %cst_15 = arith.constant 0.000000e+00 : f32
    %19 = vector.broadcast %cst_15 : f32 to vector<8x128xf32>
    %20 = arith.subf %19, %18 : vector<8x128xf32>
    %21 = math.exp %20 : vector<8x128xf32>
    %22 = math.log1p %21 : vector<8x128xf32>
    %23 = arith.addf %17, %22 : vector<8x128xf32>
    %24 = vector.extract_strided_slice %23 {offsets = [0, 0], sizes = [2, 128], strides = [1, 1]} : vector<8x128xf32> to vector<2x128xf32>
    %c0_16 = arith.constant 0 : index
    %c0_17 = arith.constant 0 : index
    %25 = vector.load %arg2[%c0_16, %c0_17] : memref<2x128xf32, #tpu.memory_space<vmem>>, vector<2x128xf32>
    tpu.vector_store %arg2[%c0_16, %c0_17], %24 {strides = array<i32>} : memref<2x128xf32, #tpu.memory_space<vmem>>, vector<2x128xf32>,
    return
  }
}

</mosaic_0001>

<llo_original>
// kernel: bbvi_proc_forward.3
$region0: #{bbvi_proc_forward.3}
  #allocation0 [shape = 'u32[]', space=smem, size = 0x4, offset = 0x4, fixed_abs, tag = 'smem constant byte address 0x4 - core index']
  #allocation1 [shape = 'u32[144,128]{1,0:T(1,128)}', space=vmem, size = 0x12000, scoped, tag = 'internal scratch']
  #allocation2 [shape = 'f32[8,8]{1,0:T(8,128)}', space=vmem, size = 0x1000, scoped, tag = 'scratch operand']
  %s0 = inlined_call_operand.vmem [shape: f32[2,8], index: 0, kind: input, shape index: {}]
  %s1 = inlined_call_operand.vmem [shape: f32[56,128], index: 1, kind: input, shape index: {}]
  %s2 = inlined_call_operand.vmem [shape: f32[2,128], index: 2, kind: output, shape index: {}]
  %s3 = sld [smem:[#allocation0]]
  $region18: #{bbvi_proc_forward.3} parent=0
    _
  %s5 = ssub.s32 1, %s3
  %s6 = scalar_select 0, %s5, %s3
  // Predicated region
  $region2: #{bbvi_proc_forward.3} parent=0 // pred_check
    _
  $region3: #{bbvi_proc_forward.3} parent=0 // pred_check_branch
    %8 = sbr.rel (0) target = $region5
  $region4: #{bbvi_proc_forward.3} parent=0 // pred_region
    _
  $region5: #{bbvi_proc_forward.3} parent=0 // pred_fallthru
    _
  // Predicated region
  $region6: #{bbvi_proc_forward.3} parent=0 // pred_check
    _
  $region7: #{bbvi_proc_forward.3} parent=0 // pred_check_branch
    %10 = sbr.rel (0) target = $region9
  $region8: #{bbvi_proc_forward.3} parent=0 // pred_region
    _
  $region9: #{bbvi_proc_forward.3} parent=0 // pred_fallthru
    _
  %vm11 = vcmask 64512
  %12 = vst.msk [vmem:[#allocation2] sm:$0xff] %vm11, 0.0
  %v13 = vld [vmem:[%s0] sm:$0x3]
  %vm14 = vcmask 58368
  %15 = vst.msk [vmem:[#allocation2] sm:$0x3] %vm14, %v13
  %v16 = vld [vmem:[#allocation2] sm:$0xff]
  %v17 = vld [vmem:[%s1] sm:$0xff]
  %v18 = vld [vmem:[%s1 + $0x8] sm:$0x1]
  %v19 = vld [vmem:[%s1 + $0x10] sm:$0xff]
  %v20 = vld [vmem:[%s1 + $0x18] sm:$0xff]
  %v21 = vld [vmem:[%s1 + $0x20] sm:$0xff]
  %v22 = vld [vmem:[%s1 + $0x28] sm:$0xff]
  %v23 = vld [vmem:[%s1 + $0x30] sm:$0x1]
  %v24 = vlaneseq
  %v25 = vshrl.u32 %v24, 7
  %v26 = vsub.s32 0, %v25
  %v27 = vrot.slane %v18, %v26
  %v29 = vsel %vm11, %v16, 0
  %31 = vmatprep.subr.mxu0 0.0
  %32 = vmatpush1.msra.mxu0 %v17
  %33 = vmatprep.subr.mxu0 0.0
  %34 = vmatpush1.msra.mxu0 0.0
  %35 = vmatprep.subr.mxu0 0.0
  %36 = vmatpush1.msra.mxu0 0.0
  %37 = vmatprep.subr.mxu0 0.0
  %38 = vmatpush1.msra.mxu0 0.0
  %39 = vmatprep.subr.mxu0 0.0
  %40 = vmatpush1.msra.mxu0 0.0
  %41 = vmatprep.subr.mxu0 0.0
  %42 = vmatpush1.msra.mxu0 0.0
  %43 = vmatprep.subr.mxu0 0.0
  %44 = vmatpush1.msra.mxu0 0.0
  %45 = vmatprep.subr.mxu0 0.0
  %46 = vmatpush1.msra.mxu0 0.0
  %47 = vmatprep.subr.mxu0 0.0
  %48 = vmatpush1.msra.mxu0 0.0
  %49 = vmatprep.subr.mxu0 0.0
  %50 = vmatpush1.msra.mxu0 0.0
  %51 = vmatprep.subr.mxu0 0.0
  %52 = vmatpush1.msra.mxu0 0.0
  %53 = vmatprep.subr.mxu0 0.0
  %54 = vmatpush1.msra.mxu0 0.0
  %55 = vmatprep.subr.mxu0 0.0
  %56 = vmatpush1.msra.mxu0 0.0
  %57 = vmatprep.subr.mxu0 0.0
  %58 = vmatpush1.msra.mxu0 0.0
  %59 = vmatprep.subr.mxu0 0.0
  %60 = vmatpush1.msra.mxu0 0.0
  %61 = vmatprep.subr.mxu0 0.0
  %62 = vmatpush1.msra.mxu0 0.0
  %63 = vmatprep.subr.mxu0 0.0
  %64 = vmatpush1.msra.mxu0 0.0
  %65 = vmatprep.subr.mxu0 0.0
  %66 = vmatpush1.msra.mxu0 0.0
  %67 = vmatprep.subr.mxu0 0.0
  %68 = vmatpush1.msra.mxu0 0.0
  %69 = vmatprep.subr.mxu0 0.0
  %70 = vmatpush1.msra.mxu0 0.0
  %71 = vmatprep.subr.mxu0 0.0
  %72 = vmatpush1.msra.mxu0 0.0
  %73 = vmatprep.subr.mxu0 0.0
  %74 = vmatpush1.msra.mxu0 0.0
  %75 = vmatprep.subr.mxu0 0.0
  %76 = vmatpush1.msra.mxu0 0.0
  %77 = vmatprep.subr.mxu0 0.0
  %78 = vmatpush1.msra.mxu0 0.0
  %79 = vmatprep.subr.mxu0 0.0
  %80 = vmatpush1.msra.mxu0 0.0
  %81 = vmatprep.subr.mxu0 0.0
  %82 = vmatpush1.msra.mxu0 0.0
  %83 = vmatprep.subr.mxu0 0.0
  %84 = vmatpush1.msra.mxu0 0.0
  %85 = vmatprep.subr.mxu0 0.0
  %86 = vmatpush1.msra.mxu0 0.0
  %87 = vmatprep.subr.mxu0 0.0
  %88 = vmatpush1.msra.mxu0 0.0
  %89 = vmatprep.subr.mxu0 0.0
  %90 = vmatpush1.msra.mxu0 0.0
  %91 = vmatprep.subr.mxu0 0.0
  %92 = vmatpush1.msra.mxu0 0.0
  %93 = vmatprep.subr.mxu0 0.0
  %94 = vmatpush1.msra.mxu0 0.0
  %95 = vmatprep.mubr.f32.mxu0 0.0
  %96 = vmatmul.mubr.f32.gmra.mrb[0].mxu0 %v29
  %v97 = vpop.f32.mrb[0].mxu0
  %v98 = vadd.f32 %v27, %v97
  %v99 = vpop.f32.mrb[0].mxu0
  %100 = vdwg.mxu0
  %v101 = vlaneseq
  %v102 = vshrl.u32 %v101, 7
  %v103 = vsub.s32 0, %v102
  %v104 = vrot.slane %v23, %v103
  %vm105 = vcmask 261120
  %v107 = vsel %vm105, %v98, 0
  %109 = vmatprep.subr.mxu0 0.0
  %110 = vmatpush1.msra.mxu0 %v19
  %111 = vmatprep.subr.mxu0 0.0
  %112 = vmatpush1.msra.mxu0 %v20
  %113 = vmatprep.subr.mxu0 0.0
  %114 = vmatpush1.msra.mxu0 %v21
  %115 = vmatprep.subr.mxu0 0.0
  %116 = vmatpush1.msra.mxu0 %v22
  %117 = vmatprep.subr.mxu0 0.0
  %118 = vmatpush1.msra.mxu0 0.0
  %119 = vmatprep.subr.mxu0 0.0
  %120 = vmatpush1.msra.mxu0 0.0
  %121 = vmatprep.subr.mxu0 0.0
  %122 = vmatpush1.msra.mxu0 0.0
  %123 = vmatprep.subr.mxu0 0.0
  %124 = vmatpush1.msra.mxu0 0.0
  %125 = vmatprep.subr.mxu0 0.0
  %126 = vmatpush1.msra.mxu0 0.0
  %127 = vmatprep.subr.mxu0 0.0
  %128 = vmatpush1.msra.mxu0 0.0
  %129 = vmatprep.subr.mxu0 0.0
  %130 = vmatpush1.msra.mxu0 0.0
  %131 = vmatprep.subr.mxu0 0.0
  %132 = vmatpush1.msra.mxu0 0.0
  %133 = vmatprep.subr.mxu0 0.0
  %134 = vmatpush1.msra.mxu0 0.0
  %135 = vmatprep.subr.mxu0 0.0
  %136 = vmatpush1.msra.mxu0 0.0
  %137 = vmatprep.subr.mxu0 0.0
  %138 = vmatpush1.msra.mxu0 0.0
  %139 = vmatprep.subr.mxu0 0.0
  %140 = vmatpush1.msra.mxu0 0.0
  %141 = vmatprep.subr.mxu0 0.0
  %142 = vmatpush1.msra.mxu0 0.0
  %143 = vmatprep.subr.mxu0 0.0
  %144 = vmatpush1.msra.mxu0 0.0
  %145 = vmatprep.subr.mxu0 0.0
  %146 = vmatpush1.msra.mxu0 0.0
  %147 = vmatprep.subr.mxu0 0.0
  %148 = vmatpush1.msra.mxu0 0.0
  %149 = vmatprep.subr.mxu0 0.0
  %150 = vmatpush1.msra.mxu0 0.0
  %151 = vmatprep.subr.mxu0 0.0
  %152 = vmatpush1.msra.mxu0 0.0
  %153 = vmatprep.subr.mxu0 0.0
  %154 = vmatpush1.msra.mxu0 0.0
  %155 = vmatprep.subr.mxu0 0.0
  %156 = vmatpush1.msra.mxu0 0.0
  %157 = vmatprep.subr.mxu0 0.0
  %158 = vmatpush1.msra.mxu0 0.0
  %159 = vmatprep.subr.mxu0 0.0
  %160 = vmatpush1.msra.mxu0 0.0
  %161 = vmatprep.subr.mxu0 0.0
  %162 = vmatpush1.msra.mxu0 0.0
  %163 = vmatprep.subr.mxu0 0.0
  %164 = vmatpush1.msra.mxu0 0.0
  %165 = vmatprep.subr.mxu0 0.0
  %166 = vmatpush1.msra.mxu0 0.0
  %167 = vmatprep.subr.mxu0 0.0
  %168 = vmatpush1.msra.mxu0 0.0
  %169 = vmatprep.subr.mxu0 0.0
  %170 = vmatpush1.msra.mxu0 0.0
  %171 = vmatprep.subr.mxu0 0.0
  %172 = vmatpush1.msra.mxu0 0.0
  %173 = vmatprep.mubr.f32.mxu0 0.0
  %174 = vmatmul.mubr.f32.gmra.mrb[0].mxu0 %v107
  %v175 = vpop.f32.mrb[0].mxu0
  %v176 = vadd.f32 %v104, %v175
  %v177 = vpop.f32.mrb[0].mxu0
  %178 = vdwg.mxu0
  %v179 = vmax.f32 %v176, 0.0
  %v180 = vand.u32 2147483647, %v176
  %v181 = vsub.f32 0.0, %v180
  %v182 = vmul.f32 %v181, 1.442695
  %v183 = vpow.pop %v182
  %v184 = vadd.f32 %v183, 1.0
  %v185 = vlog2.pop %v184
  %v186 = vmul.f32 %v185, 0.6931472
  %v187 = vmul.f32 -0.5, %v183
  %v188 = vadd.f32 %v187, 1.0
  %v189 = vmul.f32 %v188, %v183
  %v190 = vand.u32 2147483647, %v183
  %vm191 = vcmp.lt.f32.partialorder %v190, 0.0004427343
  %v192 = vsel %vm191, %v189, %v186
  %v193 = vadd.f32 %v179, %v192
  %194 = vst [vmem:[%s2] sm:$0x3] %v193
  // Predicated region
  $region10: #{bbvi_proc_forward.3} parent=0 // pred_check
    _
  $region11: #{bbvi_proc_forward.3} parent=0 // pred_check_branch
    %196 = sbr.rel (0) target = $region13
  $region12: #{bbvi_proc_forward.3} parent=0 // pred_region
    _
  $region13: #{bbvi_proc_forward.3} parent=0 // pred_fallthru
    _
  // Predicated region
  $region14: #{bbvi_proc_forward.3} parent=0 // pred_check
    _
  $region15: #{bbvi_proc_forward.3} parent=0 // pred_check_branch
    %198 = sbr.rel (0) target = $region17
  $region16: #{bbvi_proc_forward.3} parent=0 // pred_region
    _
  $region17: #{bbvi_proc_forward.3} parent=0 // pred_fallthru
    _

</llo_original>
